<compile_context>
chip_gen: v6e
topology: v6e:2x2x1
jax: 0.10.0
libtpu: 0.0.40
codegen_flags: <defaults>
</compile_context>

<pallas_src>
import jax
import jax.numpy as jnp
from jax.experimental import pallas as pl
from jax.experimental.pallas import tpu as pltpu


# Below this size, pallas_call launch overhead dominates; XLA's native copy is
# already at HBM roofline with zero per-tile overhead, so use it instead.
_MIN_PALLAS_BYTES = 1 << 20  # 1 MiB


def _dma_copy_kernel(x_hbm, o_hbm, sem):
    # Single whole-array HBM->HBM DMA: no VMEM staging, no vreg traffic, no
    # (8,128) layout constraints; the DMA engine streams at HBM roofline.
    # TODO(synk): on multi-TensorCore chips (v7x) split this DMA across cores
    # (CORE_PARALLEL / core_map) so each TC drives its own HBM path.
    cp = pltpu.make_async_copy(x_hbm, o_hbm, sem)
    cp.start()
    cp.wait()


def _materialized_identity(x):
    """Physically distinct copy of `x` (same shape/dtype/values).

    Only used when the caller needs a new buffer; the default FakeBlock path
    returns the input directly at zero cost.
    """
    nbytes = x.size * x.dtype.itemsize
    if nbytes < _MIN_PALLAS_BYTES:
        # Tiny tensors (like the demo's 2x4x16x16): native XLA copy wins.
        return jnp.copy(x)

    return pl.pallas_call(
        _dma_copy_kernel,
        out_shape=jax.ShapeDtypeStruct(x.shape, x.dtype),
        in_specs=[pl.BlockSpec(memory_space=pl.ANY)],   # raw HBM ref, no auto-DMA
        out_specs=pl.BlockSpec(memory_space=pl.ANY),    # raw HBM ref
        scratch_shapes=[pltpu.SemaphoreType.DMA],
        cost_estimate=pl.CostEstimate(
            flops=0, transcendentals=0, bytes_accessed=2 * nbytes),
    )(x)


def fake_block_forward(x, c=None, materialize=False):
    """FakeBlock.forward: (output, log_det, split) = (input, 0, None).

    Default (materialize=False): zero-cost identity — no Pallas call, no HBM
    traffic, exactly matching the PyTorch module's `output = input`.
    materialize=True: produce a physically distinct buffer (HBM->HBM DMA for
    large tensors, native copy for small ones).
    """
    del c  # unused; kept for signature parity with the PyTorch module
    output = _materialized_identity(x) if materialize else x
    log_det = jnp.zeros((), dtype=jnp.float32)  # scalar 0 in log-det convention
    split = None
    return output, log_det, split


def fake_block_reverse(output, c=None, split=None, materialize=False):
    """FakeBlock.reverse: identity."""
    del c, split
    return _materialized_identity(output) if materialize else output


if __name__ == "__main__":
    key = jax.random.PRNGKey(0)
    k1, k2 = jax.random.split(key)

    # Small NCHW input consistent with a flow block: batch=2, channels=4, 16x16.
    x = jax.random.normal(k1, (2, 4, 16, 16), dtype=jnp.float32)

    # --- Default (optimal) path: identity, zero HBM traffic. ---
    out, log_det, split = fake_block_forward(x)
    out = jax.block_until_ready(out)
    assert out.shape == x.shape and out.dtype == x.dtype
    assert jnp.array_equal(out, x)
    assert float(jax.block_until_ready(log_det)) == 0.0
    assert split is None

    # --- Materialized path on the small tensor: XLA-native copy fallback. ---
    out_m, log_det_m, split_m = fake_block_forward(x, materialize=True)
    out_m = jax.block_until_ready(out_m)
    assert out_m.shape == x.shape and out_m.dtype == x.dtype
    assert jnp.array_equal(out_m, x)
    assert float(jax.block_until_ready(log_det_m)) == 0.0
    assert split_m is None

    # --- Materialized path on a larger tensor: exercises the HBM->HBM DMA
    #     Pallas kernel (2 MiB f32 > _MIN_PALLAS_BYTES). ---
    y = jax.random.normal(k2, (512, 1024), dtype=jnp.float32)
    out_y, log_det_y, split_y = fake_block_forward(y, materialize=True)
    out_y = jax.block_until_ready(out_y)
    assert out_y.shape == y.shape and out_y.dtype == y.dtype
    assert jnp.array_equal(out_y, y)
    assert float(jax.block_until_ready(log_det_y)) == 0.0
    assert split_y is None

    # --- Reverse round-trips (both paths). ---
    x_rec = jax.block_until_ready(fake_block_reverse(out))
    assert jnp.array_equal(x_rec, x)
    y_rec = jax.block_until_ready(fake_block_reverse(out_y, materialize=True))
    assert jnp.array_equal(y_rec, y)

    print("KERNEL_OK")
</pallas_src>

<mosaic_0001>
module attributes {stable_mosaic.version = 11 : i64} {
  func.func @_dma_copy_kernel(%arg0: memref<512x1024xf32, #tpu.memory_space<any>>, %arg1: memref<512x1024xf32, #tpu.memory_space<any>>, %arg2: memref<!tpu.dma_semaphore, #tpu.memory_space<semaphore_mem>>) attributes {dimension_semantics = [], scalar_prefetch = 0 : i64, scratch_operands = 1 : i64, tpu.core_type = #tpu.core_type<tc>} {
    tpu.enqueue_dma source(%arg0 : memref<512x1024xf32, #tpu.memory_space<any>>) target(%arg1 : memref<512x1024xf32, #tpu.memory_space<any>>) target_semaphore(%arg2 : memref<!tpu.dma_semaphore, #tpu.memory_space<semaphore_mem>>)
    tpu.wait_dma2 semaphore(%arg2 : memref<!tpu.dma_semaphore, #tpu.memory_space<semaphore_mem>>) src(%arg0 : memref<512x1024xf32, #tpu.memory_space<any>>) dst(%arg1 : memref<512x1024xf32, #tpu.memory_space<any>>)
    return
  }
}

</mosaic_0001>

<llo_original>
// kernel: tpu_custom_call.1
$region0: #{tpu_custom_call.1}
  #allocation0 [shape = 'u32[]', space=smem, size = 0x4, offset = 0x4, fixed_abs, tag = 'smem constant byte address 0x4 - core index']
  #allocation1 [shape = 'u32[144,128]{1,0:T(1,128)}', space=vmem, size = 0x12000, scoped, tag = 'internal scratch']
  #allocation2 [shape = 's32[1]{0}', space=sflag, size = 0x4, scoped, tag = 'scratch operand']
  #allocation3 [shape = 's32[]', space=sflag, size = 0x4, offset = 0, fixed_abs, tag = 'sflag constant byte address 0x0 - dummy sync flag']
  #allocation4 [shape = 'u32[0]{0}', space=smem, size = 0, offset = 0, fixed_abs, tag = 'smem constant byte address 0x0 - null']
  %s0 = inlined_call_operand.hbm [shape: f32[512,1024], index: 0, kind: input, shape index: {}]
  %s1 = inlined_call_operand.hbm [shape: f32[512,1024], index: 1, kind: output, shape index: {}]
  %s2 = sld [smem:[#allocation0]]
  $region2: #{tpu_custom_call.1} parent=0
    _
  %s4 = ssub.s32 1, %s2
  %s5 = scalar_select 0, %s4, %s2
  %s7 = sshll.u32 1, 14
  %s8 = sxor.u32 4294967295, %s7
  %12 = dma.general %s0, 65536, %s1, [#allocation2], 131072, [#allocation4], 0, 0
  %s13 = smul.u32 8, 64
  %s14 = smul.u32 %s13, 8
  %s15 = sshll.u32 %s14, 4
  %16 = dma.done [#allocation2], %s15
  %17 = vsyncmov [#allocation2]
  %s18 = vpop.sfrf %17
  %p19 = scmp.eq.s32.totalorder %s18, 0
  %p20 = pneg %p19
  %22 = shalt.err (%p20)

</llo_original>
